<compile_context>
chip_gen: v6e
topology: v6e:2x2x1
jax: 0.10.0
libtpu: 0.0.40
codegen_flags: <defaults>
</compile_context>

<pallas_src>
import jax
import jax.numpy as jnp
import numpy as np
from jax import lax
from jax.experimental import pallas as pl
from jax.experimental.pallas import tpu as pltpu


def simloss_kernel(pred_ref, gt_ref, textn_ref, out_ref):
    pred = pred_ref[...].astype(jnp.float32)        # [Bt, D]
    gt = gt_ref[...].astype(jnp.float32)            # [Bt, D]
    txt_n = textn_ref[...].astype(jnp.float32)      # [T, D], pre-normalized (constant)

    # L2-normalize the patch embeddings. These are lane-dense [Bt, D] ops (D >= 128);
    # rsqrt goes to the EUP. No epsilon, matching torch's x / x.norm().
    pred_n = pred * lax.rsqrt(jnp.sum(pred * pred, axis=-1, keepdims=True))
    gt_n = gt * lax.rsqrt(jnp.sum(gt * gt, axis=-1, keepdims=True))

    # Similarities in the transposed [T, Bt] layout (patches on lanes, prompts on
    # sublanes): contract on D of both operands (A @ B^T — the q @ k^T pattern).
    dn = (((1,), (1,)), ((), ()))
    pred_sim = lax.dot_general(txt_n, pred_n, dn,
                               preferred_element_type=jnp.float32)     # [T, Bt]
    gt_sim = lax.dot_general(txt_n, gt_n, dn,
                             preferred_element_type=jnp.float32)       # [T, Bt]

    # log_softmax(100 * pred_sim) over the T (sublane) axis; keep the max-shift
    # (the x100 scale can overflow exp otherwise).
    z = 100.0 * pred_sim
    z = z - jnp.max(z, axis=0, keepdims=True)
    log_q = z - jnp.log(jnp.sum(jnp.exp(z), axis=0, keepdims=True))    # [T, Bt]

    # softmax(gt_sim): cosine sims are bounded in [-1, 1], so skip the max-shift.
    eg = jnp.exp(gt_sim)                                               # [T, Bt]
    denom = jnp.sum(eg, axis=0, keepdims=True)                         # [1, Bt]
    log_p = gt_sim - jnp.log(denom)                                    # [T, Bt]

    # nn.KLDivLoss(reduction='batchmean') with batch==1 per patch -> per-patch sum
    # over T.  Exact 1/denom folded into the reduced [1, Bt] row.
    kl = jnp.sum(eg * (log_p - log_q), axis=0, keepdims=True) / denom  # [1, Bt]

    # penalty = 2 - exp(-lambda * kl), lambda = 0.1  (one penalty per patch, lane-dense)
    out_ref[...] = 2.0 - jnp.exp(-0.1 * kl)


def sim_loss_pallas(pred_emb, gt_emb, text_emb, *, b_tile=None):
    """pred_emb/gt_emb: [B, D] patch embeddings; text_emb: [T, D].

    Returns [B] penalties; entry b equals the module's scalar penalty for patch b.
    """
    B, D = pred_emb.shape
    T, Dt = text_emb.shape
    assert Dt == D and gt_emb.shape == (B, D)

    if b_tile is None:
        # Prefer two lane-dense grid steps (keeps both v7x TensorCores busy via
        # "parallel"; on single-TC v5e/v6e one or two steps is equally fine), capped
        # at 2048 so real CLIP dims (D=512-768) stay inside v7x's default scoped
        # VMEM. For very large B pass an explicit b_tile (mult. of 128 dividing B).
        for cand in (B // 2, B // 4, B // 8):
            if cand >= 128 and cand % 128 == 0 and cand <= 2048 and B % cand == 0:
                b_tile = cand
                break
        else:
            b_tile = B
    assert B % b_tile == 0
    assert b_tile == B or b_tile % 128 == 0, \
        "b_tile must be lane-dense (multiple of 128) unless it covers all of B"

    # Text embeddings are constant across patches in a training step: normalize once
    # here (plain JAX) so the resident [T, D] VMEM block needs no per-step work.
    text_f32 = text_emb.astype(jnp.float32)
    text_n = text_f32 * lax.rsqrt(jnp.sum(text_f32 * text_f32, axis=-1, keepdims=True))

    cost = pl.CostEstimate(
        flops=4 * B * T * D + 8 * B * D,            # two sim matmuls + per-patch norms
        transcendentals=B * (2 * T + 5),            # exps/logs/rsqrt per patch
        bytes_accessed=(2 * B * D + T * D + B) * 4,
    )

    out = pl.pallas_call(
        simloss_kernel,
        out_shape=jax.ShapeDtypeStruct((1, B), jnp.float32),
        grid=(B // b_tile,),
        in_specs=[
            pl.BlockSpec((b_tile, D), lambda i: (i, 0)),
            pl.BlockSpec((b_tile, D), lambda i: (i, 0)),
            # Constant block index -> fetched once, stays resident in VMEM across steps.
            pl.BlockSpec((T, D), lambda i: (0, 0)),
        ],
        out_specs=pl.BlockSpec((1, b_tile), lambda i: (0, i)),   # lane-dense [1, B] row
        compiler_params=pltpu.CompilerParams(
            dimension_semantics=("parallel",)),       # v7x: shard patch tiles over 2 TCs
        cost_estimate=cost,
    )(pred_emb, gt_emb, text_n)
    return out[0]


def _reference_penalties(pred_emb, gt_emb, text_emb):
    """Plain-JAX reference of the module math, applied independently per patch."""
    hp = jax.lax.Precision.HIGHEST
    pn = pred_emb / jnp.linalg.norm(pred_emb, axis=-1, keepdims=True)
    gn = gt_emb / jnp.linalg.norm(gt_emb, axis=-1, keepdims=True)
    tn = text_emb / jnp.linalg.norm(text_emb, axis=-1, keepdims=True)
    pred_sim = jnp.matmul(pn, tn.T, precision=hp)
    gt_sim = jnp.matmul(gn, tn.T, precision=hp)
    log_q = jax.nn.log_softmax(100.0 * pred_sim, axis=-1)
    p = jax.nn.softmax(gt_sim, axis=-1)
    kl = jnp.sum(p * (jnp.log(p) - log_q), axis=-1)   # batchmean with batch==1 per patch
    return 2.0 - jnp.exp(-0.1 * kl)


if __name__ == "__main__":
    key = jax.random.PRNGKey(0)
    patch_size = 16        # gt_rgb / pred_rgb are [patch*patch, 3] per patch, as in the module
    B = 256                # number of (gt, pred) patch pairs batched into one kernel call
    D = 128                # (small) CLIP embedding dim
    T = 8                  # number of text descriptions
    F_TXT = 64             # synthetic text feature width

    k1, k2, k3, k4, k5 = jax.random.split(key, 5)

    pred_rgb = jax.random.uniform(k1, (B, patch_size * patch_size, 3), jnp.float32) * 255.0
    gt_rgb = jax.random.uniform(k2, (B, patch_size * patch_size, 3), jnp.float32) * 255.0
    text_feats = jax.random.normal(k3, (T, F_TXT), jnp.float32)

    # TODO(synk): open_clip pretrained image/text encoders + PIL preprocess + tokenizer
    # have no Pallas equivalent; stand them in with deterministic linear projections
    # (plain-JAX glue producing the embeddings the kernel consumes).
    W_img = jax.random.normal(k4, (patch_size * patch_size * 3, D), jnp.float32) * 0.02
    W_txt = jax.random.normal(k5, (F_TXT, D), jnp.float32) * 0.02

    pred_emb = (pred_rgb.reshape(B, -1) / 255.0) @ W_img     # [B, D]
    gt_emb = (gt_rgb.reshape(B, -1) / 255.0) @ W_img         # [B, D]
    text_emb = text_feats @ W_txt                            # [T, D]

    penalty = sim_loss_pallas(pred_emb, gt_emb, text_emb)
    jax.block_until_ready(penalty)

    ref = _reference_penalties(pred_emb, gt_emb, text_emb)
    np.testing.assert_allclose(np.asarray(penalty), np.asarray(ref), atol=5e-2, rtol=0)

    print("KERNEL_OK")
</pallas_src>

<mosaic_0001>
module attributes {stable_mosaic.version = 11 : i64} {
  func.func @simloss_kernel(%arg0: i32, %arg1: memref<128x128xf32, #tpu.memory_space<vmem>>, %arg2: memref<128x128xf32, #tpu.memory_space<vmem>>, %arg3: memref<8x128xf32, #tpu.memory_space<vmem>>, %arg4: memref<1x128xf32, #tpu.memory_space<vmem>>) attributes {dimension_semantics = [#tpu.dimension_semantics<parallel>], iteration_bounds = array<i64: 2>, scalar_prefetch = 0 : i64, scratch_operands = 0 : i64, tpu.core_type = #tpu.core_type<tc>, window_params = [{transform_indices = @transform_0, window_bounds = array<i64: 128, 128>}, {transform_indices = @transform_1, window_bounds = array<i64: 128, 128>}, {pipeline_mode = #tpu.pipeline_mode<synchronous>, transform_indices = @transform_2, window_bounds = array<i64: 8, 128>}, {transform_indices = @transform_3, window_bounds = array<i64: 1, 128>}]} {
    %c0 = arith.constant 0 : index
    %c0_0 = arith.constant 0 : index
    %0 = vector.load %arg1[%c0, %c0_0] : memref<128x128xf32, #tpu.memory_space<vmem>>, vector<128x128xf32>
    %c0_1 = arith.constant 0 : index
    %c0_2 = arith.constant 0 : index
    %1 = vector.load %arg2[%c0_1, %c0_2] : memref<128x128xf32, #tpu.memory_space<vmem>>, vector<128x128xf32>
    %c0_3 = arith.constant 0 : index
    %c0_4 = arith.constant 0 : index
    %2 = vector.load %arg3[%c0_3, %c0_4] : memref<8x128xf32, #tpu.memory_space<vmem>>, vector<8x128xf32>
    %3 = arith.mulf %0, %0 : vector<128x128xf32>
    %cst = arith.constant dense<0.000000e+00> : vector<128xf32>
    %4 = vector.multi_reduction <add>, %3, %cst [1] : vector<128x128xf32> to vector<128xf32>
    %5 = vector.shape_cast %4 : vector<128xf32> to vector<128x1xf32>
    %6 = math.rsqrt %5 : vector<128x1xf32>
    %7 = vector.broadcast %6 : vector<128x1xf32> to vector<128x128xf32>
    %8 = arith.mulf %0, %7 : vector<128x128xf32>
    %9 = arith.mulf %1, %1 : vector<128x128xf32>
    %cst_5 = arith.constant dense<0.000000e+00> : vector<128xf32>
    %10 = vector.multi_reduction <add>, %9, %cst_5 [1] : vector<128x128xf32> to vector<128xf32>
    %11 = vector.shape_cast %10 : vector<128xf32> to vector<128x1xf32>
    %12 = math.rsqrt %11 : vector<128x1xf32>
    %13 = vector.broadcast %12 : vector<128x1xf32> to vector<128x128xf32>
    %14 = arith.mulf %1, %13 : vector<128x128xf32>
    %cst_6 = arith.constant dense<0.000000e+00> : vector<8x128xf32>
    %15 = tpu.matmul %2, %8, %cst_6 {dimension_numbers = #tpu.dot_dimension_numbers<[1], [1], [0], [0], [0, 0, 1, 0], [], []>} : vector<8x128xf32>, vector<128x128xf32>, vector<8x128xf32> -> vector<8x128xf32>
    %cst_7 = arith.constant dense<0.000000e+00> : vector<8x128xf32>
    %16 = tpu.matmul %2, %14, %cst_7 {dimension_numbers = #tpu.dot_dimension_numbers<[1], [1], [0], [0], [0, 0, 1, 0], [], []>} : vector<8x128xf32>, vector<128x128xf32>, vector<8x128xf32> -> vector<8x128xf32>
    %cst_8 = arith.constant 1.000000e+02 : f32
    %17 = vector.broadcast %cst_8 : f32 to vector<8x128xf32>
    %18 = arith.mulf %17, %15 : vector<8x128xf32>
    %cst_9 = arith.constant dense<0xFF800000> : vector<128xf32>
    %19 = vector.multi_reduction <maximumf>, %18, %cst_9 [0] : vector<8x128xf32> to vector<128xf32>
    %20 = vector.shape_cast %19 : vector<128xf32> to vector<1x128xf32>
    %21 = vector.broadcast %20 : vector<1x128xf32> to vector<8x128xf32>
    %22 = arith.subf %18, %21 : vector<8x128xf32>
    %23 = math.exp %22 : vector<8x128xf32>
    %cst_10 = arith.constant dense<0.000000e+00> : vector<128xf32>
    %24 = vector.multi_reduction <add>, %23, %cst_10 [0] : vector<8x128xf32> to vector<128xf32>
    %25 = vector.shape_cast %24 : vector<128xf32> to vector<1x128xf32>
    %26 = math.log %25 : vector<1x128xf32>
    %27 = vector.broadcast %26 : vector<1x128xf32> to vector<8x128xf32>
    %28 = arith.subf %22, %27 : vector<8x128xf32>
    %29 = math.exp %16 : vector<8x128xf32>
    %cst_11 = arith.constant dense<0.000000e+00> : vector<128xf32>
    %30 = vector.multi_reduction <add>, %29, %cst_11 [0] : vector<8x128xf32> to vector<128xf32>
    %31 = vector.shape_cast %30 : vector<128xf32> to vector<1x128xf32>
    %32 = math.log %31 : vector<1x128xf32>
    %33 = vector.broadcast %32 : vector<1x128xf32> to vector<8x128xf32>
    %34 = arith.subf %16, %33 : vector<8x128xf32>
    %35 = arith.subf %34, %28 : vector<8x128xf32>
    %36 = arith.mulf %29, %35 : vector<8x128xf32>
    %cst_12 = arith.constant dense<0.000000e+00> : vector<128xf32>
    %37 = vector.multi_reduction <add>, %36, %cst_12 [0] : vector<8x128xf32> to vector<128xf32>
    %38 = vector.shape_cast %37 : vector<128xf32> to vector<1x128xf32>
    %39 = arith.divf %38, %31 : vector<1x128xf32>
    %cst_13 = arith.constant -1.000000e-01 : f32
    %40 = vector.broadcast %cst_13 : f32 to vector<1x128xf32>
    %41 = arith.mulf %40, %39 : vector<1x128xf32>
    %42 = math.exp %41 : vector<1x128xf32>
    %cst_14 = arith.constant 2.000000e+00 : f32
    %43 = vector.broadcast %cst_14 : f32 to vector<1x128xf32>
    %44 = arith.subf %43, %42 : vector<1x128xf32>
    %c0_15 = arith.constant 0 : index
    %c0_16 = arith.constant 0 : index
    %45 = vector.load %arg4[%c0_15, %c0_16] : memref<1x128xf32, #tpu.memory_space<vmem>>, vector<1x128xf32>
    tpu.vector_store %arg4[%c0_15, %c0_16], %44 {strides = array<i32>} : memref<1x128xf32, #tpu.memory_space<vmem>>, vector<1x128xf32>,
    return
  }
  func.func @transform_0(%arg0: i32) -> (i32, i32) {
    %c0_i32 = arith.constant 0 : i32
    %c0_i32_0 = arith.constant 0 : i32
    return %arg0, %c0_i32 : i32, i32
  }
  func.func @transform_1(%arg0: i32) -> (i32, i32) {
    %c0_i32 = arith.constant 0 : i32
    %c0_i32_0 = arith.constant 0 : i32
    return %arg0, %c0_i32 : i32, i32
  }
  func.func @transform_2(%arg0: i32) -> (i32, i32) {
    %c0_i32 = arith.constant 0 : i32
    %c0_i32_0 = arith.constant 0 : i32
    %c0_i32_1 = arith.constant 0 : i32
    return %c0_i32, %c0_i32_0 : i32, i32
  }
  func.func @transform_3(%arg0: i32) -> (i32, i32) {
    %c0_i32 = arith.constant 0 : i32
    %c0_i32_0 = arith.constant 0 : i32
    return %c0_i32, %arg0 : i32, i32
  }
}

</mosaic_0001>

<llo_original>
// kernel: tpu_custom_call.1
$region0: #{tpu_custom_call.1}
  #allocation0 [shape = 'u32[]', space=smem, size = 0x4, offset = 0x4, fixed_abs, tag = 'smem constant byte address 0x4 - core index']
  #allocation1 [shape = 'u32[144,128]{1,0:T(1,128)}', space=vmem, size = 0x12000, scoped, tag = 'internal scratch']
  %s0 = inlined_call_operand.hbm [shape: f32[256,128], index: 0, kind: input, shape index: {}]
  %s1 = inlined_call_operand.hbm [shape: f32[256,128], index: 1, kind: input, shape index: {}]
  %s2 = inlined_call_operand.hbm [shape: f32[8,128], index: 2, kind: input, shape index: {}]
  %s3 = inlined_call_operand.hbm [shape: f32[1,256], index: 3, kind: output, shape index: {}]
  %s4 = sld [smem:[#allocation0]]
  $region57: #{tpu_custom_call.1} parent=0
    _
  %s6 = ssub.s32 1, %s4
  %s7 = scalar_select 0, %s6, %s4
  $region1: #{tpu_custom_call.1} parent=0
    #allocation2 [shape = 'u8[131072]{0}', space=vmem, size = 0x20000, scoped, tag = 'input window, operand 0']
    #allocation3 [shape = 's32[2]{0}', space=sflag, size = 0x8, scoped, tag = 'scoped memory for tpu_custom_call.1']
    #allocation4 [shape = 's32[2]{0}', space=sflag, size = 0x8, scoped, tag = 'scoped memory for tpu_custom_call.1']
    #allocation5 [shape = 'u8[131072]{0}', space=vmem, size = 0x20000, scoped, tag = 'input window, operand 1']
    #allocation6 [shape = 's32[2]{0}', space=sflag, size = 0x8, scoped, tag = 'scoped memory for tpu_custom_call.1']
    #allocation7 [shape = 'u8[4096]{0}', space=vmem, size = 0x1000, scoped, tag = 'input window, operand 2, single buffered']
    #allocation8 [shape = 'u8[1024]{0}', space=vmem, size = 0x400, scoped, tag = 'output window, operand 0']
    %8 = vsyncpa [#allocation3], 0
    %s9 = scalar_lea.sflag [#allocation3], 1
    %10 = vsyncpa %s9, 0
    %11 = vsyncpa [#allocation6], 0
    %s12 = scalar_lea.sflag [#allocation6], 1
    %13 = vsyncpa %s12, 0
    %14 = vsyncpa [#allocation4], 0
    %s15 = scalar_lea.sflag [#allocation4], 1
    %16 = vsyncpa %s15, 0
    loop: start=0, step=1, limit=4
    $region2: #{tpu_custom_call.1} parent=1 // loop_pre_header
      _
    $region3: #{tpu_custom_call.1} parent=1 // loop_header
      %s18 = sphi 0, %s22
      %p19 = scmp.ge.s32.totalorder %s18, 4
      %s28 = sphi 0, %s30
      %s31 = sphi 0, %s28
      %s32 = sphi 0, %s31
      %s48 = sphi 0, %s32
      %s54 = sphi 0, %s56
      %s57 = sphi 0, %s54
      %s58 = sphi 0, %s57
      %s74 = sphi 0, %s58
      %s78 = sphi 0, %s78
      %s80 = sphi 0, %s78
      %s81 = sphi 0, %s80
      %s95 = sphi 0, %s81
      %s101 = sphi 0, %s103
      %s104 = sphi 0, %s101
      %s105 = sphi 0, %s104
      %s121 = sphi 0, %s105
    $region4: #{tpu_custom_call.1} parent=1 // loop_header_branch
      %21 = sbr.rel (%p19) target = $region8
    $region5: #{tpu_custom_call.1} parent=1 // loop_body
      %s23 = ssub.s32 %s18, 1
      %s24 = ssub.s32 %s18, 2
      %s25 = sadd.s32 %s18, 1
      %s26 = ssub.s32 %s18, %s25
      %p27 = scmp.eq.s32.totalorder %s26, 0
      %s29 = sadd.s32 %s28, 1
      %s30 = scalar_select %p27, %s28, %s29
      %p33 = pneg %p27
      %p34 = scmp.eq.s32.totalorder %s18, 1
      %p35 = por %p33, %p34
      %p36 = scmp.ne.s32.totalorder %s28, %s31
      %p37 = scmp.eq.s32.totalorder %s18, 0
      %p38 = por %p36, %p37
      %p39 = scmp.ne.s32.totalorder %s28, %s31
      %p40 = scmp.eq.s32.totalorder %s23, 1
      %p41 = por %p39, %p40
      %p42 = scmp.ne.s32.totalorder %s31, %s32
      %p43 = scmp.eq.s32.totalorder %s23, 0
      %p44 = por %p42, %p43
      %p45 = scmp.ne.s32.totalorder %s31, %s32
      %p46 = scmp.eq.s32.totalorder %s24, 1
      %p47 = por %p45, %p46
      %p49 = scmp.ne.s32.totalorder %s32, %s48
      %p50 = scmp.eq.s32.totalorder %s24, 0
      %p51 = por %p49, %p50
      %s52 = ssub.s32 %s18, %s25
      %p53 = scmp.eq.s32.totalorder %s52, 0
      %s55 = sadd.s32 %s54, 1
      %s56 = scalar_select %p53, %s54, %s55
      %p59 = pneg %p53
      %p60 = scmp.eq.s32.totalorder %s18, 1
      %p61 = por %p59, %p60
      %p62 = scmp.ne.s32.totalorder %s54, %s57
      %p63 = scmp.eq.s32.totalorder %s18, 0
      %p64 = por %p62, %p63
      %p65 = scmp.ne.s32.totalorder %s54, %s57
      %p66 = scmp.eq.s32.totalorder %s23, 1
      %p67 = por %p65, %p66
      %p68 = scmp.ne.s32.totalorder %s57, %s58
      %p69 = scmp.eq.s32.totalorder %s23, 0
      %p70 = por %p68, %p69
      %p71 = scmp.ne.s32.totalorder %s57, %s58
      %p72 = scmp.eq.s32.totalorder %s24, 1
      %p73 = por %p71, %p72
      %p75 = scmp.ne.s32.totalorder %s58, %s74
      %p76 = scmp.eq.s32.totalorder %s24, 0
      %p77 = por %p75, %p76
      %s79 = sadd.s32 %s78, 1
      %p82 = scmp.eq.s32.totalorder %s18, 1
      %p83 = scmp.ne.s32.totalorder %s78, %s80
      %p84 = scmp.eq.s32.totalorder %s18, 0
      %p85 = por %p83, %p84
      %p86 = scmp.ne.s32.totalorder %s78, %s80
      %p87 = scmp.eq.s32.totalorder %s23, 1
      %p88 = por %p86, %p87
      %p89 = scmp.ne.s32.totalorder %s80, %s81
      %p90 = scmp.eq.s32.totalorder %s23, 0
      %p91 = por %p89, %p90
      %p92 = scmp.ne.s32.totalorder %s80, %s81
      %p93 = scmp.eq.s32.totalorder %s24, 1
      %p94 = por %p92, %p93
      %p96 = scmp.ne.s32.totalorder %s81, %s95
      %p97 = scmp.eq.s32.totalorder %s24, 0
      %p98 = por %p96, %p97
      %s99 = ssub.s32 %s18, %s25
      %p100 = scmp.eq.s32.totalorder %s99, 0
      %s102 = sadd.s32 %s101, 1
      %s103 = scalar_select %p100, %s101, %s102
      %p106 = pneg %p100
      %p107 = scmp.eq.s32.totalorder %s18, 1
      %p108 = por %p106, %p107
      %p109 = scmp.ne.s32.totalorder %s101, %s104
      %p110 = scmp.eq.s32.totalorder %s18, 0
      %p111 = por %p109, %p110
      %p112 = scmp.ne.s32.totalorder %s101, %s104
      %p113 = scmp.eq.s32.totalorder %s23, 1
      %p114 = por %p112, %p113
      %p115 = scmp.ne.s32.totalorder %s104, %s105
      %p116 = scmp.eq.s32.totalorder %s23, 0
      %p117 = por %p115, %p116
      %p118 = scmp.ne.s32.totalorder %s104, %s105
      %p119 = scmp.eq.s32.totalorder %s24, 1
      %p120 = por %p118, %p119
      %p122 = scmp.ne.s32.totalorder %s105, %s121
      %p123 = scmp.eq.s32.totalorder %s24, 0
      %p124 = por %p122, %p123
      %p125 = scmp.le.s32.totalorder 1, %s18
      %p126 = scmp.lt.s32.totalorder %s18, 3
      %p127 = pnand %p125, %p126
      %p128 = pneg %p127
      // Predicated region
      $region9: #{tpu_custom_call.1} parent=5 // pred_check
        _
      $region10: #{tpu_custom_call.1} parent=5 // pred_check_branch
        %130 = sbr.rel (%p127) target = $region12
      $region11: #{tpu_custom_call.1} parent=5 // pred_region
        %s131 = ssub.s32 %s18, 1
        // Predicated region
        $region13: #{tpu_custom_call.1} parent=11 // pred_check
          %p132 = pneg %p91
        $region14: #{tpu_custom_call.1} parent=11 // pred_check_branch
          %134 = sbr.rel (%p132) target = $region16
        $region15: #{tpu_custom_call.1} parent=11 // pred_region
          %s136 = ssub.s32 128, 128
          %137 = vsyncadd [#allocation6], %s136
          %s139 = sshll.u32 [#allocation7], 4
          %s140 = int_to_ptr.vmem [resolvable:$true] %s139
          %142 = dma.hbm_to_vmem [thread:$0]  %s2, 128, %s140, [#allocation6]
        $region16: #{tpu_custom_call.1} parent=11 // pred_fallthru
          _
      $region12: #{tpu_custom_call.1} parent=5 // pred_fallthru
        _
      %p143 = scmp.lt.s32.totalorder %s18, 2
      // Predicated region
      $region17: #{tpu_custom_call.1} parent=5 // pred_check
        %p144 = pneg %p143
      $region18: #{tpu_custom_call.1} parent=5 // pred_check_branch
        %146 = sbr.rel (%p144) target = $region20
      $region19: #{tpu_custom_call.1} parent=5 // pred_region
        // Predicated region
        $region21: #{tpu_custom_call.1} parent=19 // pred_check
          %p147 = pneg %p38
        $region22: #{tpu_custom_call.1} parent=19 // pred_check_branch
          %149 = sbr.rel (%p147) target = $region24
        $region23: #{tpu_custom_call.1} parent=19 // pred_region
          %s150 = sand.u32 %s28, 1
          %s151 = scalar_lea.sflag [#allocation3], %s150
          %s152 = sand.u32 %s28, 1
          %s153 = smul.addr %s152, 128
          %s154 = scalar_lea.vmem [#allocation2], %s153
          %s155 = smul.u32 16, %s18
          %s157 = ssub.s32 2048, 2048
          %158 = vsyncadd %s151, %s157
          %s159 = smul.addr %s155, 128
          %s160 = scalar_lea.hbm %s0, %s159
          %s161 = sshll.u32 %s154, 4
          %s162 = int_to_ptr.vmem [resolvable:$true] %s161
          %167 = dma.hbm_to_vmem [thread:$0]  %s160, 2048, %s162, %s151, 128, 128, 8
        $region24: #{tpu_custom_call.1} parent=19 // pred_fallthru
          _
        // Predicated region
        $region25: #{tpu_custom_call.1} parent=19 // pred_check
          %p168 = pneg %p64
        $region26: #{tpu_custom_call.1} parent=19 // pred_check_branch
          %170 = sbr.rel (%p168) target = $region28
        $region27: #{tpu_custom_call.1} parent=19 // pred_region
          %s171 = sand.u32 %s18, 1
          %s172 = scalar_lea.sflag [#allocation6], %s171
          %s173 = sand.u32 %s54, 1
          %s174 = smul.addr %s173, 128
          %s175 = scalar_lea.vmem [#allocation5], %s174
          %s176 = smul.u32 16, %s18
          %s178 = ssub.s32 2048, 2048
          %179 = vsyncadd %s172, %s178
          %s180 = smul.addr %s176, 128
          %s181 = scalar_lea.hbm %s1, %s180
          %s182 = sshll.u32 %s175, 4
          %s183 = int_to_ptr.vmem [resolvable:$true] %s182
          %188 = dma.hbm_to_vmem [thread:$0]  %s181, 2048, %s183, %s172, 128, 128, 8
        $region28: #{tpu_custom_call.1} parent=19 // pred_fallthru
          _
      $region20: #{tpu_custom_call.1} parent=5 // pred_fallthru
        _
      %p189 = scmp.le.s32.totalorder 1, %s18
      %p190 = scmp.lt.s32.totalorder %s18, 3
      %p191 = pnand %p189, %p190
      %p192 = pneg %p191
      // Predicated region
      $region29: #{tpu_custom_call.1} parent=5 // pred_check
        _
      $region30: #{tpu_custom_call.1} parent=5 // pred_check_branch
        %194 = sbr.rel (%p191) target = $region32
      $region31: #{tpu_custom_call.1} parent=5 // pred_region
        %s195 = ssub.s32 %s18, 1
        %s196 = sand.u32 %s31, 1
        %s197 = scalar_lea.sflag [#allocation3], %s196
        %s198 = sand.u32 %s31, 1
        %s199 = smul.addr %s198, 128
        %s200 = scalar_lea.vmem [#allocation2], %s199
        // Predicated region
        $region33: #{tpu_custom_call.1} parent=31 // pred_check
          %p201 = pneg %p44
        $region34: #{tpu_custom_call.1} parent=31 // pred_check_branch
          %203 = sbr.rel (%p201) target = $region36
        $region35: #{tpu_custom_call.1} parent=31 // pred_region
          %204 = dma.done %s197, 2048
        $region36: #{tpu_custom_call.1} parent=31 // pred_fallthru
          _
        %s205 = sand.u32 %s23, 1
        %s206 = scalar_lea.sflag [#allocation6], %s205
        %s207 = sand.u32 %s57, 1
        %s208 = smul.addr %s207, 128
        %s209 = scalar_lea.vmem [#allocation5], %s208
        // Predicated region
        $region37: #{tpu_custom_call.1} parent=31 // pred_check
          %p210 = pneg %p70
        $region38: #{tpu_custom_call.1} parent=31 // pred_check_branch
          %212 = sbr.rel (%p210) target = $region40
        $region39: #{tpu_custom_call.1} parent=31 // pred_region
          %213 = dma.done %s206, 2048
        $region40: #{tpu_custom_call.1} parent=31 // pred_fallthru
          _
        // Predicated region
        $region41: #{tpu_custom_call.1} parent=31 // pred_check
          %p214 = pneg %p91
        $region42: #{tpu_custom_call.1} parent=31 // pred_check_branch
          %216 = sbr.rel (%p214) target = $region44
        $region43: #{tpu_custom_call.1} parent=31 // pred_region
          %217 = dma.done [#allocation6], 128
        $region44: #{tpu_custom_call.1} parent=31 // pred_fallthru
          _
        %s218 = sand.u32 %s31, 1
        %s219 = scalar_lea.sflag [#allocation3], %s218
        %s220 = sand.u32 %s31, 1
        %s221 = smul.addr %s220, 128
        %s222 = scalar_lea.vmem [#allocation2], %s221
        %p223 = pneg %p44
        %p224 = pneg %p41
        %s225 = sand.u32 %s23, 1
        %s226 = scalar_lea.sflag [#allocation6], %s225
        %s227 = sand.u32 %s57, 1
        %s228 = smul.addr %s227, 128
        %s229 = scalar_lea.vmem [#allocation5], %s228
        %p230 = pneg %p70
        %p231 = pneg %p67
        %p232 = pneg %p91
        %p233 = pneg %p88
        %p234 = pneg %p117
        %p235 = pneg %p114
        %s236 = sand.u32 %s104, 1
        %s237 = scalar_lea.sflag [#allocation4], %s236
        %s238 = sand.u32 %s104, 1
        %s239 = scalar_lea.vmem [#allocation8], %s238
        %s240 = smul.u32 16, %s23
        %s241 = smul.u32 16, %s23
        %v242 = vld [vmem:[%s200] sm:$0xff]
        %v243 = vld [vmem:[%s200 + $0x8] sm:$0xff]
        %v244 = vld [vmem:[%s200 + $0x10] sm:$0xff]
        %v245 = vld [vmem:[%s200 + $0x18] sm:$0xff]
        %v246 = vld [vmem:[%s200 + $0x20] sm:$0xff]
        %v247 = vld [vmem:[%s200 + $0x28] sm:$0xff]
        %v248 = vld [vmem:[%s200 + $0x30] sm:$0xff]
        %v249 = vld [vmem:[%s200 + $0x38] sm:$0xff]
        %v250 = vld [vmem:[%s200 + $0x40] sm:$0xff]
        %v251 = vld [vmem:[%s200 + $0x48] sm:$0xff]
        %v252 = vld [vmem:[%s200 + $0x50] sm:$0xff]
        %v253 = vld [vmem:[%s200 + $0x58] sm:$0xff]
        %v254 = vld [vmem:[%s200 + $0x60] sm:$0xff]
        %v255 = vld [vmem:[%s200 + $0x68] sm:$0xff]
        %v256 = vld [vmem:[%s200 + $0x70] sm:$0xff]
        %v257 = vld [vmem:[%s200 + $0x78] sm:$0xff]
        %v258 = vld [vmem:[%s209] sm:$0xff]
        %v259 = vld [vmem:[%s209 + $0x8] sm:$0xff]
        %v260 = vld [vmem:[%s209 + $0x10] sm:$0xff]
        %v261 = vld [vmem:[%s209 + $0x18] sm:$0xff]
        %v262 = vld [vmem:[%s209 + $0x20] sm:$0xff]
        %v263 = vld [vmem:[%s209 + $0x28] sm:$0xff]
        %v264 = vld [vmem:[%s209 + $0x30] sm:$0xff]
        %v265 = vld [vmem:[%s209 + $0x38] sm:$0xff]
        %v266 = vld [vmem:[%s209 + $0x40] sm:$0xff]
        %v267 = vld [vmem:[%s209 + $0x48] sm:$0xff]
        %v268 = vld [vmem:[%s209 + $0x50] sm:$0xff]
        %v269 = vld [vmem:[%s209 + $0x58] sm:$0xff]
        %v270 = vld [vmem:[%s209 + $0x60] sm:$0xff]
        %v271 = vld [vmem:[%s209 + $0x68] sm:$0xff]
        %v272 = vld [vmem:[%s209 + $0x70] sm:$0xff]
        %v273 = vld [vmem:[%s209 + $0x78] sm:$0xff]
        %v274 = vld [vmem:[#allocation7] sm:$0xff]
        %v275 = vmul.f32 %v242, %v242
        %v276 = vmul.f32 %v243, %v243
        %v277 = vmul.f32 %v244, %v244
        %v278 = vmul.f32 %v245, %v245
        %v279 = vmul.f32 %v246, %v246
        %v280 = vmul.f32 %v247, %v247
        %v281 = vmul.f32 %v248, %v248
        %v282 = vmul.f32 %v249, %v249
        %v283 = vmul.f32 %v250, %v250
        %v284 = vmul.f32 %v251, %v251
        %v285 = vmul.f32 %v252, %v252
        %v286 = vmul.f32 %v253, %v253
        %v287 = vmul.f32 %v254, %v254
        %v288 = vmul.f32 %v255, %v255
        %v289 = vmul.f32 %v256, %v256
        %v290 = vmul.f32 %v257, %v257
        %291 = vadd.xlane.f32.xlu0 %v275
        %v292 = vpop.xlane.xlu0 %291
        %293 = vadd.xlane.f32.xlu0 %v276
        %v294 = vpop.xlane.xlu0 %293
        %295 = vadd.xlane.f32.xlu0 %v277
        %v296 = vpop.xlane.xlu0 %295
        %297 = vadd.xlane.f32.xlu0 %v278
        %v298 = vpop.xlane.xlu0 %297
        %299 = vadd.xlane.f32.xlu0 %v279
        %v300 = vpop.xlane.xlu0 %299
        %301 = vadd.xlane.f32.xlu0 %v280
        %v302 = vpop.xlane.xlu0 %301
        %303 = vadd.xlane.f32.xlu0 %v281
        %v304 = vpop.xlane.xlu0 %303
        %305 = vadd.xlane.f32.xlu0 %v282
        %v306 = vpop.xlane.xlu0 %305
        %307 = vadd.xlane.f32.xlu0 %v283
        %v308 = vpop.xlane.xlu0 %307
        %309 = vadd.xlane.f32.xlu0 %v284
        %v310 = vpop.xlane.xlu0 %309
        %311 = vadd.xlane.f32.xlu0 %v285
        %v312 = vpop.xlane.xlu0 %311
        %313 = vadd.xlane.f32.xlu0 %v286
        %v314 = vpop.xlane.xlu0 %313
        %315 = vadd.xlane.f32.xlu0 %v287
        %v316 = vpop.xlane.xlu0 %315
        %317 = vadd.xlane.f32.xlu0 %v288
        %v318 = vpop.xlane.xlu0 %317
        %319 = vadd.xlane.f32.xlu0 %v289
        %v320 = vpop.xlane.xlu0 %319
        %321 = vadd.xlane.f32.xlu0 %v290
        %v322 = vpop.xlane.xlu0 %321
        %v323 = vrsqrt.pop %v292
        %v324 = vrsqrt.pop %v294
        %v325 = vrsqrt.pop %v296
        %v326 = vrsqrt.pop %v298
        %v327 = vrsqrt.pop %v300
        %v328 = vrsqrt.pop %v302
        %v329 = vrsqrt.pop %v304
        %v330 = vrsqrt.pop %v306
        %v331 = vrsqrt.pop %v308
        %v332 = vrsqrt.pop %v310
        %v333 = vrsqrt.pop %v312
        %v334 = vrsqrt.pop %v314
        %v335 = vrsqrt.pop %v316
        %v336 = vrsqrt.pop %v318
        %v337 = vrsqrt.pop %v320
        %v338 = vrsqrt.pop %v322
        %v339 = vmul.f32 %v242, %v323
        %v340 = vmul.f32 %v243, %v324
        %v341 = vmul.f32 %v244, %v325
        %v342 = vmul.f32 %v245, %v326
        %v343 = vmul.f32 %v246, %v327
        %v344 = vmul.f32 %v247, %v328
        %v345 = vmul.f32 %v248, %v329
        %v346 = vmul.f32 %v249, %v330
        %v347 = vmul.f32 %v250, %v331
        %v348 = vmul.f32 %v251, %v332
        %v349 = vmul.f32 %v252, %v333
        %v350 = vmul.f32 %v253, %v334
        %v351 = vmul.f32 %v254, %v335
        %v352 = vmul.f32 %v255, %v336
        %v353 = vmul.f32 %v256, %v337
        %v354 = vmul.f32 %v257, %v338
        %v355 = vmul.f32 %v258, %v258
        %v356 = vmul.f32 %v259, %v259
        %v357 = vmul.f32 %v260, %v260
        %v358 = vmul.f32 %v261, %v261
        %v359 = vmul.f32 %v262, %v262
        %v360 = vmul.f32 %v263, %v263
        %v361 = vmul.f32 %v264, %v264
        %v362 = vmul.f32 %v265, %v265
        %v363 = vmul.f32 %v266, %v266
        %v364 = vmul.f32 %v267, %v267
        %v365 = vmul.f32 %v268, %v268
        %v366 = vmul.f32 %v269, %v269
        %v367 = vmul.f32 %v270, %v270
        %v368 = vmul.f32 %v271, %v271
        %v369 = vmul.f32 %v272, %v272
        %v370 = vmul.f32 %v273, %v273
        %371 = vadd.xlane.f32.xlu0 %v355
        %v372 = vpop.xlane.xlu0 %371
        %373 = vadd.xlane.f32.xlu0 %v356
        %v374 = vpop.xlane.xlu0 %373
        %375 = vadd.xlane.f32.xlu0 %v357
        %v376 = vpop.xlane.xlu0 %375
        %377 = vadd.xlane.f32.xlu0 %v358
        %v378 = vpop.xlane.xlu0 %377
        %379 = vadd.xlane.f32.xlu0 %v359
        %v380 = vpop.xlane.xlu0 %379
        %381 = vadd.xlane.f32.xlu0 %v360
        %v382 = vpop.xlane.xlu0 %381
        %383 = vadd.xlane.f32.xlu0 %v361
        %v384 = vpop.xlane.xlu0 %383
        %385 = vadd.xlane.f32.xlu0 %v362
        %v386 = vpop.xlane.xlu0 %385
        %387 = vadd.xlane.f32.xlu0 %v363
        %v388 = vpop.xlane.xlu0 %387
        %389 = vadd.xlane.f32.xlu0 %v364
        %v390 = vpop.xlane.xlu0 %389
        %391 = vadd.xlane.f32.xlu0 %v365
        %v392 = vpop.xlane.xlu0 %391
        %393 = vadd.xlane.f32.xlu0 %v366
        %v394 = vpop.xlane.xlu0 %393
        %395 = vadd.xlane.f32.xlu0 %v367
        %v396 = vpop.xlane.xlu0 %395
        %397 = vadd.xlane.f32.xlu0 %v368
        %v398 = vpop.xlane.xlu0 %397
        %399 = vadd.xlane.f32.xlu0 %v369
        %v400 = vpop.xlane.xlu0 %399
        %401 = vadd.xlane.f32.xlu0 %v370
        %v402 = vpop.xlane.xlu0 %401
        %v403 = vrsqrt.pop %v372
        %v404 = vrsqrt.pop %v374
        %v405 = vrsqrt.pop %v376
        %v406 = vrsqrt.pop %v378
        %v407 = vrsqrt.pop %v380
        %v408 = vrsqrt.pop %v382
        %v409 = vrsqrt.pop %v384
        %v410 = vrsqrt.pop %v386
        %v411 = vrsqrt.pop %v388
        %v412 = vrsqrt.pop %v390
        %v413 = vrsqrt.pop %v392
        %v414 = vrsqrt.pop %v394
        %v415 = vrsqrt.pop %v396
        %v416 = vrsqrt.pop %v398
        %v417 = vrsqrt.pop %v400
        %v418 = vrsqrt.pop %v402
        %v419 = vmul.f32 %v258, %v403
        %v420 = vmul.f32 %v259, %v404
        %v421 = vmul.f32 %v260, %v405
        %v422 = vmul.f32 %v261, %v406
        %v423 = vmul.f32 %v262, %v407
        %v424 = vmul.f32 %v263, %v408
        %v425 = vmul.f32 %v264, %v409
        %v426 = vmul.f32 %v265, %v410
        %v427 = vmul.f32 %v266, %v411
        %v428 = vmul.f32 %v267, %v412
        %v429 = vmul.f32 %v268, %v413
        %v430 = vmul.f32 %v269, %v414
        %v431 = vmul.f32 %v270, %v415
        %v432 = vmul.f32 %v271, %v416
        %v433 = vmul.f32 %v272, %v417
        %v434 = vmul.f32 %v273, %v418
        %435 = vmatprep.subr.mxu0 0.0
        %436 = vmatpush1.xpose.msra.mxu0 %v354
        %437 = vmatprep.subr.mxu0 0.0
        %438 = vmatpush1.xpose.msra.mxu0 %v353
        %439 = vmatprep.subr.mxu0 0.0
        %440 = vmatpush1.xpose.msra.mxu0 %v352
        %441 = vmatprep.subr.mxu0 0.0
        %442 = vmatpush1.xpose.msra.mxu0 %v351
        %443 = vmatprep.subr.mxu0 0.0
        %444 = vmatpush1.xpose.msra.mxu0 %v350
        %445 = vmatprep.subr.mxu0 0.0
        %446 = vmatpush1.xpose.msra.mxu0 %v349
        %447 = vmatprep.subr.mxu0 0.0
        %448 = vmatpush1.xpose.msra.mxu0 %v348
        %449 = vmatprep.subr.mxu0 0.0
        %450 = vmatpush1.xpose.msra.mxu0 %v347
        %451 = vmatprep.subr.mxu0 0.0
        %452 = vmatpush1.xpose.msra.mxu0 %v346
        %453 = vmatprep.subr.mxu0 0.0
        %454 = vmatpush1.xpose.msra.mxu0 %v345
        %455 = vmatprep.subr.mxu0 0.0
        %456 = vmatpush1.xpose.msra.mxu0 %v344
        %457 = vmatprep.subr.mxu0 0.0
        %458 = vmatpush1.xpose.msra.mxu0 %v343
        %459 = vmatprep.subr.mxu0 0.0
        %460 = vmatpush1.xpose.msra.mxu0 %v342
        %461 = vmatprep.subr.mxu0 0.0
        %462 = vmatpush1.xpose.msra.mxu0 %v341
        %463 = vmatprep.subr.mxu0 0.0
        %464 = vmatpush1.xpose.msra.mxu0 %v340
        %465 = vmatprep.subr.mxu0 0.0
        %466 = vmatpush1.xpose.msra.mxu0 %v339
        %467 = vmatprep.subr.mxu0 0.0
        %468 = vmatpush2.xpose.msra.mxu0 0.0
        %469 = vmatprep.subr.mxu0 0.0
        %470 = vmatpush2.xpose.msra.mxu0 0.0
        %471 = vmatprep.subr.mxu0 0.0
        %472 = vmatpush2.xpose.msra.mxu0 0.0
        %473 = vmatprep.subr.mxu0 0.0
        %474 = vmatpush2.xpose.msra.mxu0 0.0
        %475 = vmatprep.subr.mxu0 0.0
        %476 = vmatpush2.xpose.msra.mxu0 0.0
        %477 = vmatprep.subr.mxu0 0.0
        %478 = vmatpush2.xpose.msra.mxu0 0.0
        %479 = vmatprep.subr.mxu0 0.0
        %480 = vmatpush2.xpose.msra.mxu0 0.0
        %481 = vmatprep.subr.mxu0 0.0
        %482 = vmatpush2.xpose.msra.mxu0 0.0
        %483 = vmatprep.subr.mxu0 0.0
        %484 = vmatpush2.xpose.msra.mxu0 0.0
        %485 = vmatprep.subr.mxu0 0.0
        %486 = vmatpush2.xpose.msra.mxu0 0.0
        %487 = vmatprep.subr.mxu0 0.0
        %488 = vmatpush2.xpose.msra.mxu0 0.0
        %489 = vmatprep.subr.mxu0 0.0
        %490 = vmatpush2.xpose.msra.mxu0 0.0
        %491 = vmatprep.subr.mxu0 0.0
        %492 = vmatpush2.xpose.msra.mxu0 0.0
        %493 = vmatprep.subr.mxu0 0.0
        %494 = vmatpush2.xpose.msra.mxu0 0.0
        %495 = vmatprep.subr.mxu0 0.0
        %496 = vmatpush2.xpose.msra.mxu0 0.0
        %497 = vmatprep.subr.mxu0 0.0
        %498 = vmatpush2.xpose.msra.mxu0 0.0
        %499 = vmatprep.mubr.f32.mxu0 0.0
        %500 = vmatmul.mubr.f32.gmra.mxu0 %v274
        %v501 = vpop.f32.mrf.mxu0
        %v502 = vadd.f32 0.0, %v501
        %v503 = vpop.f32.mrf.mxu0
        %504 = vdwg.mxu0
        %505 = vmatprep.subr.mxu0 0.0
        %506 = vmatpush1.xpose.msra.mxu0 %v434
        %507 = vmatprep.subr.mxu0 0.0
        %508 = vmatpush1.xpose.msra.mxu0 %v433
        %509 = vmatprep.subr.mxu0 0.0
        %510 = vmatpush1.xpose.msra.mxu0 %v432
        %511 = vmatprep.subr.mxu0 0.0
        %512 = vmatpush1.xpose.msra.mxu0 %v431
        %513 = vmatprep.subr.mxu0 0.0
        %514 = vmatpush1.xpose.msra.mxu0 %v430
        %515 = vmatprep.subr.mxu0 0.0
        %516 = vmatpush1.xpose.msra.mxu0 %v429
        %517 = vmatprep.subr.mxu0 0.0
        %518 = vmatpush1.xpose.msra.mxu0 %v428
        %519 = vmatprep.subr.mxu0 0.0
        %520 = vmatpush1.xpose.msra.mxu0 %v427
        %521 = vmatprep.subr.mxu0 0.0
        %522 = vmatpush1.xpose.msra.mxu0 %v426
        %523 = vmatprep.subr.mxu0 0.0
        %524 = vmatpush1.xpose.msra.mxu0 %v425
        %525 = vmatprep.subr.mxu0 0.0
        %526 = vmatpush1.xpose.msra.mxu0 %v424
        %527 = vmatprep.subr.mxu0 0.0
        %528 = vmatpush1.xpose.msra.mxu0 %v423
        %529 = vmatprep.subr.mxu0 0.0
        %530 = vmatpush1.xpose.msra.mxu0 %v422
        %531 = vmatprep.subr.mxu0 0.0
        %532 = vmatpush1.xpose.msra.mxu0 %v421
        %533 = vmatprep.subr.mxu0 0.0
        %534 = vmatpush1.xpose.msra.mxu0 %v420
        %535 = vmatprep.subr.mxu0 0.0
        %536 = vmatpush1.xpose.msra.mxu0 %v419
        %537 = vmatprep.subr.mxu0 0.0
        %538 = vmatpush2.xpose.msra.mxu0 0.0
        %539 = vmatprep.subr.mxu0 0.0
        %540 = vmatpush2.xpose.msra.mxu0 0.0
        %541 = vmatprep.subr.mxu0 0.0
        %542 = vmatpush2.xpose.msra.mxu0 0.0
        %543 = vmatprep.subr.mxu0 0.0
        %544 = vmatpush2.xpose.msra.mxu0 0.0
        %545 = vmatprep.subr.mxu0 0.0
        %546 = vmatpush2.xpose.msra.mxu0 0.0
        %547 = vmatprep.subr.mxu0 0.0
        %548 = vmatpush2.xpose.msra.mxu0 0.0
        %549 = vmatprep.subr.mxu0 0.0
        %550 = vmatpush2.xpose.msra.mxu0 0.0
        %551 = vmatprep.subr.mxu0 0.0
        %552 = vmatpush2.xpose.msra.mxu0 0.0
        %553 = vmatprep.subr.mxu0 0.0
        %554 = vmatpush2.xpose.msra.mxu0 0.0
        %555 = vmatprep.subr.mxu0 0.0
        %556 = vmatpush2.xpose.msra.mxu0 0.0
        %557 = vmatprep.subr.mxu0 0.0
        %558 = vmatpush2.xpose.msra.mxu0 0.0
        %559 = vmatprep.subr.mxu0 0.0
        %560 = vmatpush2.xpose.msra.mxu0 0.0
        %561 = vmatprep.subr.mxu0 0.0
        %562 = vmatpush2.xpose.msra.mxu0 0.0
        %563 = vmatprep.subr.mxu0 0.0
        %564 = vmatpush2.xpose.msra.mxu0 0.0
        %565 = vmatprep.subr.mxu0 0.0
        %566 = vmatpush2.xpose.msra.mxu0 0.0
        %567 = vmatprep.subr.mxu0 0.0
        %568 = vmatpush2.xpose.msra.mxu0 0.0
        %569 = vmatprep.mubr.f32.mxu0 0.0
        %570 = vmatmul.mubr.f32.gmra.mxu0 %v274
        %v571 = vpop.f32.mrf.mxu0
        %v572 = vadd.f32 0.0, %v571
        %v573 = vpop.f32.mrf.mxu0
        %574 = vdwg.mxu0
        %v575 = vmul.f32 %v502, 100.0
        %v576 = vrot.slane %v575, 4
        %v577 = vmax.f32 %v575, %v576
        %v578 = vrot.slane %v577, 2
        %v579 = vmax.f32 %v577, %v578
        %v580 = vrot.slane %v579, 1
        %v581 = vmax.f32 %v579, %v580
        %v582 = vsub.f32 %v575, %v581
        %v583 = vmul.f32 %v582, 1.442695
        %v584 = vpow.pop %v583
        %v585 = vrot.slane %v584, 4
        %v586 = vadd.f32 %v584, %v585
        %v587 = vrot.slane %v586, 2
        %v588 = vadd.f32 %v586, %v587
        %v589 = vrot.slane %v588, 1
        %v590 = vadd.f32 %v588, %v589
        %v591 = vlog2.pop %v590
        %v592 = vmul.f32 %v591, 0.6931472
        %v593 = vsub.f32 %v582, %v592
        %v594 = vmul.f32 %v572, 1.442695
        %v595 = vpow.pop %v594
        %v596 = vrot.slane %v595, 4
        %v597 = vadd.f32 %v595, %v596
        %v598 = vrot.slane %v597, 2
        %v599 = vadd.f32 %v597, %v598
        %v600 = vrot.slane %v599, 1
        %v601 = vadd.f32 %v599, %v600
        %v602 = vlog2.pop %v601
        %v603 = vmul.f32 %v602, 0.6931472
        %v604 = vsub.f32 %v572, %v603
        %v605 = vsub.f32 %v604, %v593
        %v606 = vmul.f32 %v595, %v605
        %v607 = vrot.slane %v606, 4
        %v608 = vadd.f32 %v606, %v607
        %v609 = vrot.slane %v608, 2
        %v610 = vadd.f32 %v608, %v609
        %v611 = vrot.slane %v610, 1
        %v612 = vadd.f32 %v610, %v611
        %v613 = vrcp.pop %v601
        %v614 = vmul.f32 %v612, %v613
        %v615 = vmul.f32 %v614, -0.1
        %v616 = vmul.f32 %v615, 1.442695
        %v617 = vpow.pop %v616
        %v618 = vsub.f32 2.0, %v617
        %619 = vst [vmem:[%s239] sm:$0x1] %v618
        %s620 = sand.u32 %s104, 1
        %s621 = scalar_lea.sflag [#allocation4], %s620
        %s622 = sand.u32 %s104, 1
        %s623 = scalar_lea.vmem [#allocation8], %s622
        // Predicated region
        $region45: #{tpu_custom_call.1} parent=31 // pred_check
          %p624 = pneg %p114
        $region46: #{tpu_custom_call.1} parent=31 // pred_check_branch
          %626 = sbr.rel (%p624) target = $region48
        $region47: #{tpu_custom_call.1} parent=31 // pred_region
          %s628 = ssub.s32 16, 16
          %629 = vsyncadd %s621, %s628
          %s630 = smul.addr %s23, 16
          %s631 = scalar_lea.hbm %s3, %s630
          %s633 = sshll.u32 %s623, 4
          %s634 = int_to_ptr.vmem [resolvable:$true] %s633
          %636 = dma.vmem_to_hbm [thread:$0]  %s634, 16, %s631, %s621
        $region48: #{tpu_custom_call.1} parent=31 // pred_fallthru
          _
      $region32: #{tpu_custom_call.1} parent=5 // pred_fallthru
        _
      %p637 = scmp.le.s32.totalorder 2, %s18
      // Predicated region
      $region49: #{tpu_custom_call.1} parent=5 // pred_check
        %p638 = pneg %p637
      $region50: #{tpu_custom_call.1} parent=5 // pred_check_branch
        %640 = sbr.rel (%p638) target = $region52
      $region51: #{tpu_custom_call.1} parent=5 // pred_region
        %s641 = ssub.s32 %s18, 2
        // Predicated region
        $region53: #{tpu_custom_call.1} parent=51 // pred_check
          %p642 = pneg %p120
        $region54: #{tpu_custom_call.1} parent=51 // pred_check_branch
          %644 = sbr.rel (%p642) target = $region56
        $region55: #{tpu_custom_call.1} parent=51 // pred_region
          %s645 = sand.u32 %s105, 1
          %s646 = scalar_lea.sflag [#allocation4], %s645
          %s647 = sand.u32 %s105, 1
          %s648 = scalar_lea.vmem [#allocation8], %s647
          %649 = dma.done %s646, 16
        $region56: #{tpu_custom_call.1} parent=51 // pred_fallthru
          _
      $region52: #{tpu_custom_call.1} parent=5 // pred_fallthru
        _
    $region6: #{tpu_custom_call.1} parent=1 // loop_footer
      %s22 = sadd.s32 1, %s18
    $region7: #{tpu_custom_call.1} parent=1 // loop_footer_branch
      %17 = sbr.rel target = $region3
    $region8: #{tpu_custom_call.1} parent=1 // loop_exit
      _
    %650 = vsyncpa [#allocation3], 1
    %s651 = scalar_lea.sflag [#allocation3], 1
    %652 = vsyncpa %s651, 1
    %653 = vsyncpa [#allocation6], 1
    %s654 = scalar_lea.sflag [#allocation6], 1
    %655 = vsyncpa %s654, 1
    %656 = vsyncpa [#allocation4], 1
    %s657 = scalar_lea.sflag [#allocation4], 1
    %658 = vsyncpa %s657, 1

</llo_original>
